<compile_context>
chip_gen: v7x
topology: tpu7x:2x2x1
jax: 0.10.0
libtpu: 0.0.40
codegen_flags: <defaults>
</compile_context>

<pallas_src>
import jax
import jax.numpy as jnp
import numpy as np
from jax.experimental import pallas as pl
from jax.experimental.pallas import tpu as pltpu


_CB = 8        # sublane chunk rows
_CN_MAX = 512  # lane chunk (multiple of 128); an (8,512) f32 value = 4 vregs


def _met_kernel(lin_w_ref, lin_b_ref, last_w_ref, last_b_ref,   # SMEM params
                score_ref, ptsin_ref, ptcos_ref,                # (TB, TN) tiles
                weight_ref, met_ref,                            # outputs
                accx_ref, accy_ref):                            # (TB,128) scratch
    H = last_w_ref.shape[0]
    L = lin_b_ref.shape[0] // H

    ni = pl.program_id(1)

    @pl.when(ni == 0)
    def _():
        accx_ref[...] = jnp.zeros_like(accx_ref)
        accy_ref[...] = jnp.zeros_like(accy_ref)

    TB, TN = score_ref.shape
    CB = min(_CB, TB)
    CN = min(_CN_MAX, TN)
    n_rb = TB // CB
    n_cn = TN // CN
    rem = TN - n_cn * CN           # tail lane chunk (multiple of 128)

    # ---- Hoist all tiny-MLP parameters out of the chunk loops (scalars). ----
    w0 = [[lin_w_ref[i * H + p] for p in range(H)] for i in range(H)]
    c0 = [w0[i][0] + lin_b_ref[i] for i in range(H)]        # bias folded into s^0
    wl = [[[lin_w_ref[(l * H + i) * H + j] for j in range(H)]
           for i in range(H)] for l in range(L)]
    bl = [[lin_b_ref[l * H + i] for i in range(H)] for l in range(L)]
    lw = [last_w_ref[j] for j in range(H)]
    lb = last_b_ref[0]

    def chunk(rb, cn, csize):
        s = score_ref[pl.ds(rb, CB), pl.ds(cn, csize)]

        # Layer 0 fused with the power basis (Horner), scalar-broadcast VPU ops.
        h = []
        for i in range(H):
            if H == 1:
                a = jnp.full_like(s, c0[i])
            else:
                a = s * w0[i][H - 1] + (c0[i] if H == 2 else w0[i][H - 2])
                for p in range(H - 3, -1, -1):
                    a = a * s + (c0[i] if p == 0 else w0[i][p])
            h.append(jnp.tanh(a))

        # Remaining layers: h_i = tanh(b_l[i] + sum_j W_l[i,j] * h_j).
        for l in range(1, L):
            nxt = []
            for i in range(H):
                a = h[0] * wl[l][i][0] + bl[l][i]
                for j in range(1, H):
                    a = a + h[j] * wl[l][i][j]
                nxt.append(jnp.tanh(a))
            h = nxt

        # Final H -> 1 projection -> per-particle weight (lane-dense store).
        w = h[0] * lw[0] + lb
        for j in range(1, H):
            w = w + h[j] * lw[j]
        weight_ref[pl.ds(rb, CB), pl.ds(cn, csize)] = w

        # Masked MET partials; fold lane groups to 128 lanes with vreg adds.
        ps = ptsin_ref[pl.ds(rb, CB), pl.ds(cn, csize)] * w
        pc = ptcos_ref[pl.ds(rb, CB), pl.ds(cn, csize)] * w
        px = ps[:, 0:128]
        py = pc[:, 0:128]
        for g in range(1, csize // 128):
            px = px + ps[:, g * 128:(g + 1) * 128]
            py = py + pc[:, g * 128:(g + 1) * 128]
        accx_ref[pl.ds(rb, CB), :] += px
        accy_ref[pl.ds(rb, CB), :] += py

    @pl.loop(0, n_rb)
    def _row(ri):
        rb = pl.multiple_of(ri * CB, CB)

        @pl.loop(0, n_cn)
        def _col(ci):
            cn = pl.multiple_of(ci * CN, CN)
            chunk(rb, cn, CN)

        if rem:
            chunk(rb, n_cn * CN, rem)      # static tail offset, 128-aligned

    @pl.when(ni == pl.num_programs(1) - 1)
    def _():
        mx = jnp.sum(accx_ref[...], axis=-1, keepdims=True)   # single XLU reduce
        my = jnp.sum(accy_ref[...], axis=-1, keepdims=True)
        met = jnp.sqrt(mx * mx + my * my)                     # (TB, 1)
        met_ref[...] = jnp.broadcast_to(met, met_ref.shape)   # lane-dense (TB,128)


def _round_up(v, m):
    return ((v + m - 1) // m) * m


def _cdiv(a, b):
    return (a + b - 1) // b


def met_layer_forward(x, score, mask, lin_w, lin_b, last_w, last_b,
                      *, tb_max=256, tn_max=2048):
    """x: (B, N, F) with pt = x[...,0], phi = x[...,2]; score/mask: (B, N).
    lin_w: (L, H, H); lin_b: (L, H); last_w: (1, H); last_b: (1,).
    Returns (met: (B,), weight: (B, N))."""
    B, N, _ = x.shape

    # ---- Padding-aware tile selection; >=2 batch blocks when possible (v7x) -
    nb = max(_cdiv(_round_up(B, 8), tb_max), 2 if _round_up(B, 8) >= 16 else 1)
    TB = _round_up(_cdiv(B, nb), 8)
    nb = _cdiv(B, TB)
    B_pad = nb * TB

    nn = _cdiv(_round_up(N, 128), tn_max)
    TN = _round_up(_cdiv(N, nn), 128)
    nn = _cdiv(N, TN)
    N_pad = nn * TN

    # ---- Wrapper fusion: fold mask & sin/cos into the slice/cast/pad pass ---
    pt = x[:, :, 0].astype(jnp.float32)
    phi = x[:, :, 2].astype(jnp.float32)
    m = mask.astype(jnp.float32)
    pt_sin = pt * jnp.sin(phi) * m
    pt_cos = pt * jnp.cos(phi) * m
    score = score.astype(jnp.float32)

    pad = ((0, B_pad - B), (0, N_pad - N))
    score_p = jnp.pad(score, pad)
    ptsin_p = jnp.pad(pt_sin, pad)    # padded entries are 0 -> never pollute met
    ptcos_p = jnp.pad(pt_cos, pad)

    # Tiny parameter tensors -> flat f32 vectors in SMEM (no VMEM tiles/DMAs).
    lin_w_f = lin_w.reshape(-1).astype(jnp.float32)     # (L*H*H,)
    lin_b_f = lin_b.reshape(-1).astype(jnp.float32)     # (L*H,)
    last_w_f = last_w.reshape(-1).astype(jnp.float32)   # (H,)
    last_b_f = last_b.reshape(-1).astype(jnp.float32)   # (1,)

    grid = (nb, nn)
    smem_spec = pl.BlockSpec(memory_space=pltpu.MemorySpace.SMEM)

    weight_p, met_p = pl.pallas_call(
        _met_kernel,
        out_shape=(jax.ShapeDtypeStruct((B_pad, N_pad), jnp.float32),
                   jax.ShapeDtypeStruct((B_pad, 128), jnp.float32)),
        grid=grid,
        in_specs=[
            smem_spec, smem_spec, smem_spec, smem_spec,          # MLP params
            pl.BlockSpec((TB, TN), lambda bi, ni: (bi, ni)),     # score
            pl.BlockSpec((TB, TN), lambda bi, ni: (bi, ni)),     # pt*mask*sin(phi)
            pl.BlockSpec((TB, TN), lambda bi, ni: (bi, ni)),     # pt*mask*cos(phi)
        ],
        out_specs=(
            pl.BlockSpec((TB, TN), lambda bi, ni: (bi, ni)),     # weight
            pl.BlockSpec((TB, 128), lambda bi, ni: (bi, 0)),     # met (lane-dense)
        ),
        scratch_shapes=[pltpu.VMEM((TB, 128), jnp.float32),      # met_x partials
                        pltpu.VMEM((TB, 128), jnp.float32)],     # met_y partials
        compiler_params=pltpu.CompilerParams(
            dimension_semantics=("parallel", "arbitrary"),
            vmem_limit_bytes=32 * 1024 * 1024),
    )(lin_w_f, lin_b_f, last_w_f, last_b_f, score_p, ptsin_p, ptcos_p)

    return met_p[:B, 0], weight_p[:B, :N]


def met_layer_ref(x, score, mask, lin_w, lin_b, last_w, last_b):
    """Pure-JAX reference mirroring the PyTorch forward exactly."""
    pt, phi = x[:, :, 0], x[:, :, 2]
    H = lin_w.shape[1]
    basis = jnp.stack([score ** p for p in range(H)], axis=-1)
    for l in range(lin_w.shape[0]):
        basis = jnp.tanh(basis @ lin_w[l].T + lin_b[l])
    weight = (basis @ last_w.T + last_b)[..., 0]
    pt = pt * weight
    met_x = jnp.sum(pt * jnp.sin(phi) * mask, axis=-1)
    met_y = jnp.sum(pt * jnp.cos(phi) * mask, axis=-1)
    met = jnp.sqrt(met_x ** 2 + met_y ** 2)
    return met, weight


if __name__ == "__main__":
    # config: met_poly_degree=3 -> hidden=4, met_layers=2
    B, N, F = 2, 8, 4
    poly_degree, met_layers = 3, 2
    H = poly_degree + 1

    key = jax.random.PRNGKey(0)
    ks = jax.random.split(key, 7)
    x = jax.random.normal(ks[0], (B, N, F), jnp.float32)
    score = jax.random.uniform(ks[1], (B, N), jnp.float32)
    mask = (jax.random.uniform(ks[2], (B, N)) > 0.3).astype(jnp.float32)

    # Deterministic synthetic parameters (PyTorch Linear shapes: (out, in)).
    lin_w = 0.5 * jax.random.normal(ks[3], (met_layers, H, H), jnp.float32)
    lin_b = 0.1 * jax.random.normal(ks[4], (met_layers, H), jnp.float32)
    last_w = 0.5 * jax.random.normal(ks[5], (1, H), jnp.float32)
    last_b = 0.1 * jax.random.normal(ks[6], (1,), jnp.float32)

    met, weight = met_layer_forward(x, score, mask, lin_w, lin_b,
                                    last_w, last_b)
    jax.block_until_ready((met, weight))

    met_r, weight_r = met_layer_ref(x, score, mask, lin_w, lin_b,
                                    last_w, last_b)
    np.testing.assert_allclose(np.asarray(met), np.asarray(met_r),
                               rtol=1e-5, atol=1e-5)
    np.testing.assert_allclose(np.asarray(weight), np.asarray(weight_r),
                               rtol=1e-5, atol=1e-5)
    print("KERNEL_OK")
</pallas_src>

<mosaic_0001>
module attributes {stable_mosaic.version = 11 : i64} {
  func.func @_met_kernel(%arg0: i32, %arg1: i32, %arg2: memref<32xf32, #tpu.memory_space<smem>>, %arg3: memref<8xf32, #tpu.memory_space<smem>>, %arg4: memref<4xf32, #tpu.memory_space<smem>>, %arg5: memref<1xf32, #tpu.memory_space<smem>>, %arg6: memref<8x128xf32, #tpu.memory_space<vmem>>, %arg7: memref<8x128xf32, #tpu.memory_space<vmem>>, %arg8: memref<8x128xf32, #tpu.memory_space<vmem>>, %arg9: memref<8x128xf32, #tpu.memory_space<vmem>>, %arg10: memref<8x128xf32, #tpu.memory_space<vmem>>, %arg11: memref<8x128xf32, #tpu.memory_space<vmem>>, %arg12: memref<8x128xf32, #tpu.memory_space<vmem>>) attributes {dimension_semantics = [#tpu.dimension_semantics<parallel>, #tpu.dimension_semantics<arbitrary>], iteration_bounds = array<i64: 1, 1>, scalar_prefetch = 0 : i64, scratch_operands = 2 : i64, tpu.core_type = #tpu.core_type<tc>, window_params = [{transform_indices = @transform_0, window_bounds = array<i64: 32>}, {transform_indices = @transform_1, window_bounds = array<i64: 8>}, {transform_indices = @transform_2, window_bounds = array<i64: 4>}, {transform_indices = @transform_3, window_bounds = array<i64: 1>}, {transform_indices = @transform_4, window_bounds = array<i64: 8, 128>}, {transform_indices = @transform_5, window_bounds = array<i64: 8, 128>}, {transform_indices = @transform_6, window_bounds = array<i64: 8, 128>}, {transform_indices = @transform_7, window_bounds = array<i64: 8, 128>}, {transform_indices = @transform_8, window_bounds = array<i64: 8, 128>}]} {
    %c0_i32 = arith.constant 0 : i32
    %0 = arith.cmpi eq, %arg1, %c0_i32 : i32
    %1 = arith.extui %0 : i1 to i32
    %c0_i32_0 = arith.constant 0 : i32
    %2 = arith.cmpi ne, %1, %c0_i32_0 : i32
    scf.if %2 {
      %cst = arith.constant 0.000000e+00 : f32
      %200 = vector.broadcast %cst : f32 to vector<8x128xf32>
      %c0_27 = arith.constant 0 : index
      %c0_28 = arith.constant 0 : index
      %201 = vector.load %arg11[%c0_27, %c0_28] : memref<8x128xf32, #tpu.memory_space<vmem>>, vector<8x128xf32>
      tpu.vector_store %arg11[%c0_27, %c0_28], %200 {strides = array<i32>} : memref<8x128xf32, #tpu.memory_space<vmem>>, vector<8x128xf32>,
      %cst_29 = arith.constant 0.000000e+00 : f32
      %202 = vector.broadcast %cst_29 : f32 to vector<8x128xf32>
      %c0_30 = arith.constant 0 : index
      %c0_31 = arith.constant 0 : index
      %203 = vector.load %arg12[%c0_30, %c0_31] : memref<8x128xf32, #tpu.memory_space<vmem>>, vector<8x128xf32>
      tpu.vector_store %arg12[%c0_30, %c0_31], %202 {strides = array<i32>} : memref<8x128xf32, #tpu.memory_space<vmem>>, vector<8x128xf32>,
    } else {
    }
    %c0 = arith.constant 0 : index
    %3 = memref.load %arg2[%c0] : memref<32xf32, #tpu.memory_space<smem>>
    %c1 = arith.constant 1 : index
    %4 = memref.load %arg2[%c1] : memref<32xf32, #tpu.memory_space<smem>>
    %c2 = arith.constant 2 : index
    %5 = memref.load %arg2[%c2] : memref<32xf32, #tpu.memory_space<smem>>
    %c3 = arith.constant 3 : index
    %6 = memref.load %arg2[%c3] : memref<32xf32, #tpu.memory_space<smem>>
    %c4 = arith.constant 4 : index
    %7 = memref.load %arg2[%c4] : memref<32xf32, #tpu.memory_space<smem>>
    %c5 = arith.constant 5 : index
    %8 = memref.load %arg2[%c5] : memref<32xf32, #tpu.memory_space<smem>>
    %c6 = arith.constant 6 : index
    %9 = memref.load %arg2[%c6] : memref<32xf32, #tpu.memory_space<smem>>
    %c7 = arith.constant 7 : index
    %10 = memref.load %arg2[%c7] : memref<32xf32, #tpu.memory_space<smem>>
    %c8 = arith.constant 8 : index
    %11 = memref.load %arg2[%c8] : memref<32xf32, #tpu.memory_space<smem>>
    %c9 = arith.constant 9 : index
    %12 = memref.load %arg2[%c9] : memref<32xf32, #tpu.memory_space<smem>>
    %c10 = arith.constant 10 : index
    %13 = memref.load %arg2[%c10] : memref<32xf32, #tpu.memory_space<smem>>
    %c11 = arith.constant 11 : index
    %14 = memref.load %arg2[%c11] : memref<32xf32, #tpu.memory_space<smem>>
    %c12 = arith.constant 12 : index
    %15 = memref.load %arg2[%c12] : memref<32xf32, #tpu.memory_space<smem>>
    %c13 = arith.constant 13 : index
    %16 = memref.load %arg2[%c13] : memref<32xf32, #tpu.memory_space<smem>>
    %c14 = arith.constant 14 : index
    %17 = memref.load %arg2[%c14] : memref<32xf32, #tpu.memory_space<smem>>
    %c15 = arith.constant 15 : index
    %18 = memref.load %arg2[%c15] : memref<32xf32, #tpu.memory_space<smem>>
    %c0_1 = arith.constant 0 : index
    %19 = memref.load %arg3[%c0_1] : memref<8xf32, #tpu.memory_space<smem>>
    %20 = arith.addf %3, %19 : f32
    %c1_2 = arith.constant 1 : index
    %21 = memref.load %arg3[%c1_2] : memref<8xf32, #tpu.memory_space<smem>>
    %22 = arith.addf %7, %21 : f32
    %c2_3 = arith.constant 2 : index
    %23 = memref.load %arg3[%c2_3] : memref<8xf32, #tpu.memory_space<smem>>
    %24 = arith.addf %11, %23 : f32
    %c3_4 = arith.constant 3 : index
    %25 = memref.load %arg3[%c3_4] : memref<8xf32, #tpu.memory_space<smem>>
    %26 = arith.addf %15, %25 : f32
    %c16 = arith.constant 16 : index
    %27 = memref.load %arg2[%c16] : memref<32xf32, #tpu.memory_space<smem>>
    %c17 = arith.constant 17 : index
    %28 = memref.load %arg2[%c17] : memref<32xf32, #tpu.memory_space<smem>>
    %c18 = arith.constant 18 : index
    %29 = memref.load %arg2[%c18] : memref<32xf32, #tpu.memory_space<smem>>
    %c19 = arith.constant 19 : index
    %30 = memref.load %arg2[%c19] : memref<32xf32, #tpu.memory_space<smem>>
    %c20 = arith.constant 20 : index
    %31 = memref.load %arg2[%c20] : memref<32xf32, #tpu.memory_space<smem>>
    %c21 = arith.constant 21 : index
    %32 = memref.load %arg2[%c21] : memref<32xf32, #tpu.memory_space<smem>>
    %c22 = arith.constant 22 : index
    %33 = memref.load %arg2[%c22] : memref<32xf32, #tpu.memory_space<smem>>
    %c23 = arith.constant 23 : index
    %34 = memref.load %arg2[%c23] : memref<32xf32, #tpu.memory_space<smem>>
    %c24 = arith.constant 24 : index
    %35 = memref.load %arg2[%c24] : memref<32xf32, #tpu.memory_space<smem>>
    %c25 = arith.constant 25 : index
    %36 = memref.load %arg2[%c25] : memref<32xf32, #tpu.memory_space<smem>>
    %c26 = arith.constant 26 : index
    %37 = memref.load %arg2[%c26] : memref<32xf32, #tpu.memory_space<smem>>
    %c27 = arith.constant 27 : index
    %38 = memref.load %arg2[%c27] : memref<32xf32, #tpu.memory_space<smem>>
    %c28 = arith.constant 28 : index
    %39 = memref.load %arg2[%c28] : memref<32xf32, #tpu.memory_space<smem>>
    %c29 = arith.constant 29 : index
    %40 = memref.load %arg2[%c29] : memref<32xf32, #tpu.memory_space<smem>>
    %c30 = arith.constant 30 : index
    %41 = memref.load %arg2[%c30] : memref<32xf32, #tpu.memory_space<smem>>
    %c31 = arith.constant 31 : index
    %42 = memref.load %arg2[%c31] : memref<32xf32, #tpu.memory_space<smem>>
    %c4_5 = arith.constant 4 : index
    %43 = memref.load %arg3[%c4_5] : memref<8xf32, #tpu.memory_space<smem>>
    %c5_6 = arith.constant 5 : index
    %44 = memref.load %arg3[%c5_6] : memref<8xf32, #tpu.memory_space<smem>>
    %c6_7 = arith.constant 6 : index
    %45 = memref.load %arg3[%c6_7] : memref<8xf32, #tpu.memory_space<smem>>
    %c7_8 = arith.constant 7 : index
    %46 = memref.load %arg3[%c7_8] : memref<8xf32, #tpu.memory_space<smem>>
    %c0_9 = arith.constant 0 : index
    %47 = memref.load %arg4[%c0_9] : memref<4xf32, #tpu.memory_space<smem>>
    %c1_10 = arith.constant 1 : index
    %48 = memref.load %arg4[%c1_10] : memref<4xf32, #tpu.memory_space<smem>>
    %c2_11 = arith.constant 2 : index
    %49 = memref.load %arg4[%c2_11] : memref<4xf32, #tpu.memory_space<smem>>
    %c3_12 = arith.constant 3 : index
    %50 = memref.load %arg4[%c3_12] : memref<4xf32, #tpu.memory_space<smem>>
    %c0_13 = arith.constant 0 : index
    %51 = memref.load %arg5[%c0_13] : memref<1xf32, #tpu.memory_space<smem>>
    %c0_i32_14 = arith.constant 0 : i32
    %c1_i32 = arith.constant 1 : i32
    %52 = arith.muli %c0_i32_14, %c1_i32 : i32
    %c0_i32_15 = arith.constant 0 : i32
    %53 = arith.addi %c0_i32_15, %52 : i32
    %c8_i32 = arith.constant 8 : i32
    %54 = arith.muli %53, %c8_i32 : i32
    %55 = tpu.assume_multiple %54, 8 : i32
    %c0_i32_16 = arith.constant 0 : i32
    %c1_i32_17 = arith.constant 1 : i32
    %56 = arith.muli %c0_i32_16, %c1_i32_17 : i32
    %c0_i32_18 = arith.constant 0 : i32
    %57 = arith.addi %c0_i32_18, %56 : i32
    %c128_i32 = arith.constant 128 : i32
    %58 = arith.muli %57, %c128_i32 : i32
    %59 = tpu.assume_multiple %58, 128 : i32
    %60 = arith.index_cast %55 : i32 to index
    %61 = arith.index_cast %59 : i32 to index
    %62 = vector.load %arg6[%60, %61] : memref<8x128xf32, #tpu.memory_space<vmem>>, vector<8x128xf32>
    %63 = vector.broadcast %6 : f32 to vector<8x128xf32>
    %64 = arith.mulf %62, %63 : vector<8x128xf32>
    %65 = vector.broadcast %5 : f32 to vector<8x128xf32>
    %66 = arith.addf %64, %65 : vector<8x128xf32>
    %67 = arith.mulf %66, %62 : vector<8x128xf32>
    %68 = vector.broadcast %4 : f32 to vector<8x128xf32>
    %69 = arith.addf %67, %68 : vector<8x128xf32>
    %70 = arith.mulf %69, %62 : vector<8x128xf32>
    %71 = vector.broadcast %20 : f32 to vector<8x128xf32>
    %72 = arith.addf %70, %71 : vector<8x128xf32>
    %73 = math.tanh %72 : vector<8x128xf32>
    %74 = vector.broadcast %10 : f32 to vector<8x128xf32>
    %75 = arith.mulf %62, %74 : vector<8x128xf32>
    %76 = vector.broadcast %9 : f32 to vector<8x128xf32>
    %77 = arith.addf %75, %76 : vector<8x128xf32>
    %78 = arith.mulf %77, %62 : vector<8x128xf32>
    %79 = vector.broadcast %8 : f32 to vector<8x128xf32>
    %80 = arith.addf %78, %79 : vector<8x128xf32>
    %81 = arith.mulf %80, %62 : vector<8x128xf32>
    %82 = vector.broadcast %22 : f32 to vector<8x128xf32>
    %83 = arith.addf %81, %82 : vector<8x128xf32>
    %84 = math.tanh %83 : vector<8x128xf32>
    %85 = vector.broadcast %14 : f32 to vector<8x128xf32>
    %86 = arith.mulf %62, %85 : vector<8x128xf32>
    %87 = vector.broadcast %13 : f32 to vector<8x128xf32>
    %88 = arith.addf %86, %87 : vector<8x128xf32>
    %89 = arith.mulf %88, %62 : vector<8x128xf32>
    %90 = vector.broadcast %12 : f32 to vector<8x128xf32>
    %91 = arith.addf %89, %90 : vector<8x128xf32>
    %92 = arith.mulf %91, %62 : vector<8x128xf32>
    %93 = vector.broadcast %24 : f32 to vector<8x128xf32>
    %94 = arith.addf %92, %93 : vector<8x128xf32>
    %95 = math.tanh %94 : vector<8x128xf32>
    %96 = vector.broadcast %18 : f32 to vector<8x128xf32>
    %97 = arith.mulf %62, %96 : vector<8x128xf32>
    %98 = vector.broadcast %17 : f32 to vector<8x128xf32>
    %99 = arith.addf %97, %98 : vector<8x128xf32>
    %100 = arith.mulf %99, %62 : vector<8x128xf32>
    %101 = vector.broadcast %16 : f32 to vector<8x128xf32>
    %102 = arith.addf %100, %101 : vector<8x128xf32>
    %103 = arith.mulf %102, %62 : vector<8x128xf32>
    %104 = vector.broadcast %26 : f32 to vector<8x128xf32>
    %105 = arith.addf %103, %104 : vector<8x128xf32>
    %106 = math.tanh %105 : vector<8x128xf32>
    %107 = vector.broadcast %27 : f32 to vector<8x128xf32>
    %108 = arith.mulf %73, %107 : vector<8x128xf32>
    %109 = vector.broadcast %43 : f32 to vector<8x128xf32>
    %110 = arith.addf %108, %109 : vector<8x128xf32>
    %111 = vector.broadcast %28 : f32 to vector<8x128xf32>
    %112 = arith.mulf %84, %111 : vector<8x128xf32>
    %113 = arith.addf %110, %112 : vector<8x128xf32>
    %114 = vector.broadcast %29 : f32 to vector<8x128xf32>
    %115 = arith.mulf %95, %114 : vector<8x128xf32>
    %116 = arith.addf %113, %115 : vector<8x128xf32>
    %117 = vector.broadcast %30 : f32 to vector<8x128xf32>
    %118 = arith.mulf %106, %117 : vector<8x128xf32>
    %119 = arith.addf %116, %118 : vector<8x128xf32>
    %120 = math.tanh %119 : vector<8x128xf32>
    %121 = vector.broadcast %31 : f32 to vector<8x128xf32>
    %122 = arith.mulf %73, %121 : vector<8x128xf32>
    %123 = vector.broadcast %44 : f32 to vector<8x128xf32>
    %124 = arith.addf %122, %123 : vector<8x128xf32>
    %125 = vector.broadcast %32 : f32 to vector<8x128xf32>
    %126 = arith.mulf %84, %125 : vector<8x128xf32>
    %127 = arith.addf %124, %126 : vector<8x128xf32>
    %128 = vector.broadcast %33 : f32 to vector<8x128xf32>
    %129 = arith.mulf %95, %128 : vector<8x128xf32>
    %130 = arith.addf %127, %129 : vector<8x128xf32>
    %131 = vector.broadcast %34 : f32 to vector<8x128xf32>
    %132 = arith.mulf %106, %131 : vector<8x128xf32>
    %133 = arith.addf %130, %132 : vector<8x128xf32>
    %134 = math.tanh %133 : vector<8x128xf32>
    %135 = vector.broadcast %35 : f32 to vector<8x128xf32>
    %136 = arith.mulf %73, %135 : vector<8x128xf32>
    %137 = vector.broadcast %45 : f32 to vector<8x128xf32>
    %138 = arith.addf %136, %137 : vector<8x128xf32>
    %139 = vector.broadcast %36 : f32 to vector<8x128xf32>
    %140 = arith.mulf %84, %139 : vector<8x128xf32>
    %141 = arith.addf %138, %140 : vector<8x128xf32>
    %142 = vector.broadcast %37 : f32 to vector<8x128xf32>
    %143 = arith.mulf %95, %142 : vector<8x128xf32>
    %144 = arith.addf %141, %143 : vector<8x128xf32>
    %145 = vector.broadcast %38 : f32 to vector<8x128xf32>
    %146 = arith.mulf %106, %145 : vector<8x128xf32>
    %147 = arith.addf %144, %146 : vector<8x128xf32>
    %148 = math.tanh %147 : vector<8x128xf32>
    %149 = vector.broadcast %39 : f32 to vector<8x128xf32>
    %150 = arith.mulf %73, %149 : vector<8x128xf32>
    %151 = vector.broadcast %46 : f32 to vector<8x128xf32>
    %152 = arith.addf %150, %151 : vector<8x128xf32>
    %153 = vector.broadcast %40 : f32 to vector<8x128xf32>
    %154 = arith.mulf %84, %153 : vector<8x128xf32>
    %155 = arith.addf %152, %154 : vector<8x128xf32>
    %156 = vector.broadcast %41 : f32 to vector<8x128xf32>
    %157 = arith.mulf %95, %156 : vector<8x128xf32>
    %158 = arith.addf %155, %157 : vector<8x128xf32>
    %159 = vector.broadcast %42 : f32 to vector<8x128xf32>
    %160 = arith.mulf %106, %159 : vector<8x128xf32>
    %161 = arith.addf %158, %160 : vector<8x128xf32>
    %162 = math.tanh %161 : vector<8x128xf32>
    %163 = vector.broadcast %47 : f32 to vector<8x128xf32>
    %164 = arith.mulf %120, %163 : vector<8x128xf32>
    %165 = vector.broadcast %51 : f32 to vector<8x128xf32>
    %166 = arith.addf %164, %165 : vector<8x128xf32>
    %167 = vector.broadcast %48 : f32 to vector<8x128xf32>
    %168 = arith.mulf %134, %167 : vector<8x128xf32>
    %169 = arith.addf %166, %168 : vector<8x128xf32>
    %170 = vector.broadcast %49 : f32 to vector<8x128xf32>
    %171 = arith.mulf %148, %170 : vector<8x128xf32>
    %172 = arith.addf %169, %171 : vector<8x128xf32>
    %173 = vector.broadcast %50 : f32 to vector<8x128xf32>
    %174 = arith.mulf %162, %173 : vector<8x128xf32>
    %175 = arith.addf %172, %174 : vector<8x128xf32>
    %176 = arith.index_cast %55 : i32 to index
    %177 = arith.index_cast %59 : i32 to index
    %178 = vector.load %arg9[%176, %177] : memref<8x128xf32, #tpu.memory_space<vmem>>, vector<8x128xf32>
    tpu.vector_store %arg9[%176, %177], %175 {strides = array<i32>} : memref<8x128xf32, #tpu.memory_space<vmem>>, vector<8x128xf32>,
    %179 = arith.index_cast %55 : i32 to index
    %180 = arith.index_cast %59 : i32 to index
    %181 = vector.load %arg7[%179, %180] : memref<8x128xf32, #tpu.memory_space<vmem>>, vector<8x128xf32>
    %182 = arith.mulf %181, %175 : vector<8x128xf32>
    %183 = arith.index_cast %55 : i32 to index
    %184 = arith.index_cast %59 : i32 to index
    %185 = vector.load %arg8[%183, %184] : memref<8x128xf32, #tpu.memory_space<vmem>>, vector<8x128xf32>
    %186 = arith.mulf %185, %175 : vector<8x128xf32>
    %187 = arith.index_cast %55 : i32 to index
    %c0_19 = arith.constant 0 : index
    %188 = vector.load %arg11[%187, %c0_19] : memref<8x128xf32, #tpu.memory_space<vmem>>, vector<8x128xf32>
    %189 = arith.addf %188, %182 : vector<8x128xf32>
    %190 = arith.index_cast %55 : i32 to index
    %c0_20 = arith.constant 0 : index
    %191 = vector.load %arg11[%190, %c0_20] : memref<8x128xf32, #tpu.memory_space<vmem>>, vector<8x128xf32>
    tpu.vector_store %arg11[%190, %c0_20], %189 {strides = array<i32>} : memref<8x128xf32, #tpu.memory_space<vmem>>, vector<8x128xf32>,
    %192 = arith.index_cast %55 : i32 to index
    %c0_21 = arith.constant 0 : index
    %193 = vector.load %arg12[%192, %c0_21] : memref<8x128xf32, #tpu.memory_space<vmem>>, vector<8x128xf32>
    %194 = arith.addf %193, %186 : vector<8x128xf32>
    %195 = arith.index_cast %55 : i32 to index
    %c0_22 = arith.constant 0 : index
    %196 = vector.load %arg12[%195, %c0_22] : memref<8x128xf32, #tpu.memory_space<vmem>>, vector<8x128xf32>
    tpu.vector_store %arg12[%195, %c0_22], %194 {strides = array<i32>} : memref<8x128xf32, #tpu.memory_space<vmem>>, vector<8x128xf32>,
    %c1_i32_23 = arith.constant 1 : i32
    %c1_i32_24 = arith.constant 1 : i32
    %c0_i32_25 = arith.constant 0 : i32
    %197 = arith.cmpi eq, %arg1, %c0_i32_25 : i32
    %198 = arith.extui %197 : i1 to i32
    %c0_i32_26 = arith.constant 0 : i32
    %199 = arith.cmpi ne, %198, %c0_i32_26 : i32
    scf.if %199 {
      %c0_27 = arith.constant 0 : index
      %c0_28 = arith.constant 0 : index
      %200 = vector.load %arg11[%c0_27, %c0_28] : memref<8x128xf32, #tpu.memory_space<vmem>>, vector<8x128xf32>
      %cst = arith.constant dense<0.000000e+00> : vector<8xf32>
      %201 = vector.multi_reduction <add>, %200, %cst [1] : vector<8x128xf32> to vector<8xf32>
      %202 = vector.shape_cast %201 : vector<8xf32> to vector<8x1xf32>
      %c0_29 = arith.constant 0 : index
      %c0_30 = arith.constant 0 : index
      %203 = vector.load %arg12[%c0_29, %c0_30] : memref<8x128xf32, #tpu.memory_space<vmem>>, vector<8x128xf32>
      %cst_31 = arith.constant dense<0.000000e+00> : vector<8xf32>
      %204 = vector.multi_reduction <add>, %203, %cst_31 [1] : vector<8x128xf32> to vector<8xf32>
      %205 = vector.shape_cast %204 : vector<8xf32> to vector<8x1xf32>
      %206 = arith.mulf %202, %202 : vector<8x1xf32>
      %207 = arith.mulf %205, %205 : vector<8x1xf32>
      %208 = arith.addf %206, %207 : vector<8x1xf32>
      %209 = math.sqrt %208 : vector<8x1xf32>
      %210 = vector.shape_cast %209 : vector<8x1xf32> to vector<8x1xf32>
      %211 = vector.broadcast %210 : vector<8x1xf32> to vector<8x128xf32>
      %c0_32 = arith.constant 0 : index
      %c0_33 = arith.constant 0 : index
      %212 = vector.load %arg10[%c0_32, %c0_33] : memref<8x128xf32, #tpu.memory_space<vmem>>, vector<8x128xf32>
      tpu.vector_store %arg10[%c0_32, %c0_33], %211 {strides = array<i32>} : memref<8x128xf32, #tpu.memory_space<vmem>>, vector<8x128xf32>,
    } else {
    }
    return
  }
  func.func @transform_0(%arg0: i32, %arg1: i32) -> i32 {
    %c0_i32 = arith.constant 0 : i32
    %c0_i32_0 = arith.constant 0 : i32
    return %c0_i32 : i32
  }
  func.func @transform_1(%arg0: i32, %arg1: i32) -> i32 {
    %c0_i32 = arith.constant 0 : i32
    %c0_i32_0 = arith.constant 0 : i32
    return %c0_i32 : i32
  }
  func.func @transform_2(%arg0: i32, %arg1: i32) -> i32 {
    %c0_i32 = arith.constant 0 : i32
    %c0_i32_0 = arith.constant 0 : i32
    return %c0_i32 : i32
  }
  func.func @transform_3(%arg0: i32, %arg1: i32) -> i32 {
    %c0_i32 = arith.constant 0 : i32
    %c0_i32_0 = arith.constant 0 : i32
    return %c0_i32 : i32
  }
  func.func @transform_4(%arg0: i32, %arg1: i32) -> (i32, i32) {
    %c0_i32 = arith.constant 0 : i32
    return %arg0, %arg1 : i32, i32
  }
  func.func @transform_5(%arg0: i32, %arg1: i32) -> (i32, i32) {
    %c0_i32 = arith.constant 0 : i32
    return %arg0, %arg1 : i32, i32
  }
  func.func @transform_6(%arg0: i32, %arg1: i32) -> (i32, i32) {
    %c0_i32 = arith.constant 0 : i32
    return %arg0, %arg1 : i32, i32
  }
  func.func @transform_7(%arg0: i32, %arg1: i32) -> (i32, i32) {
    %c0_i32 = arith.constant 0 : i32
    return %arg0, %arg1 : i32, i32
  }
  func.func @transform_8(%arg0: i32, %arg1: i32) -> (i32, i32) {
    %c0_i32 = arith.constant 0 : i32
    %c0_i32_0 = arith.constant 0 : i32
    return %arg0, %c0_i32 : i32, i32
  }
}

</mosaic_0001>

<llo_original>
// kernel: tpu_custom_call.1
$region0: #{tpu_custom_call.1}
  #allocation0 [shape = 'u32[]', space=smem, size = 0x4, offset = 0x4, fixed_abs, tag = 'smem constant byte address 0x4 - core index']
  #allocation1 [shape = 'u32[144,128]{1,0:T(1,128)}', space=vmem, size = 0x12000, scoped, tag = 'internal scratch']
  #allocation2 [shape = 'f32[8,128]{1,0:T(8,128)}', space=vmem, size = 0x1000, scoped, tag = 'scratch operand']
  #allocation3 [shape = 'f32[8,128]{1,0:T(8,128)}', space=vmem, size = 0x1000, scoped, tag = 'scratch operand']
  #allocation4 [shape = 'f32[1]{0:T(128)S(6)}', space=smem, size = 0x200, scoped, tag = 'scoped memory for tpu_custom_call.1']
  %s0 = inlined_call_operand.vmem [shape: f32[32], index: 0, kind: input, shape index: {}]
  %s1 = inlined_call_operand.vmem [shape: f32[8], index: 1, kind: input, shape index: {}]
  %s2 = inlined_call_operand.hbm [shape: f32[4], index: 2, kind: input, shape index: {}]
  %s3 = inlined_call_operand.<no memory space> [shape: f32[1], index: 3, kind: input, shape index: {}]
  %s4 = inlined_call_operand.vmem [shape: f32[8,128], index: 4, kind: input, shape index: {}]
  %s5 = inlined_call_operand.vmem [shape: f32[8,128], index: 5, kind: input, shape index: {}]
  %s6 = inlined_call_operand.hbm [shape: f32[8,128], index: 6, kind: input, shape index: {}]
  %s7 = inlined_call_operand.hbm [shape: f32[8,128], index: 7, kind: output, shape index: {0}]
  %s8 = inlined_call_operand.hbm [shape: f32[8,128], index: 8, kind: output, shape index: {1}]
  %9 = xla_tuple %s7, %s8
  %s10 = sld [smem:[#allocation0]]
  $region70: #{tpu_custom_call.1} parent=0
    _
  %s12 = ssub.s32 1, %s10
  %s13 = scalar_select 0, %s12, %s10
  %14 = sst [smem:[#allocation4]] %s3
  $region1: #{tpu_custom_call.1} parent=0
    #allocation5 [shape = 'u8[512]{0}', space=smem, size = 0x200, scoped, tag = 'input window, operand 0, single buffered']
    #allocation6 [shape = 's32[1]{0}', space=sflag, size = 0x4, scoped, tag = 'scoped memory for tpu_custom_call.1']
    #allocation7 [shape = 's32[1]{0}', space=sflag, size = 0x4, scoped, tag = 'scoped memory for tpu_custom_call.1']
    #allocation8 [shape = 's32[1]{0}', space=sflag, size = 0x4, scoped, tag = 'scoped memory for tpu_custom_call.1']
    #allocation9 [shape = 's32[1]{0}', space=sflag, size = 0x4, scoped, tag = 'scoped memory for tpu_custom_call.1']
    #allocation10 [shape = 'u8[512]{0}', space=smem, size = 0x200, scoped, tag = 'input window, operand 1, single buffered']
    #allocation11 [shape = 's32[1]{0}', space=sflag, size = 0x4, scoped, tag = 'scoped memory for tpu_custom_call.1']
    #allocation12 [shape = 'u8[512]{0}', space=smem, size = 0x200, scoped, tag = 'input window, operand 2, single buffered']
    #allocation13 [shape = 'u8[4096]{0}', space=vmem, size = 0x1000, scoped, tag = 'input window, operand 6, single buffered']
    #allocation14 [shape = 'u8[4096]{0}', space=vmem, size = 0x1000, scoped, tag = 'output window, operand 0, single buffered']
    #allocation15 [shape = 'u8[4096]{0}', space=vmem, size = 0x1000, scoped, tag = 'output window, operand 1, single buffered']
    #allocation16 [shape = 's32[1]{0}', space=sflag, size = 0x4, scoped, tag = 'scoped memory for tpu_custom_call.1']
    %15 = vsyncpa [#allocation9], 0
    %16 = vsyncpa [#allocation11], 0
    %17 = vsyncpa [#allocation8], 0
    %18 = vsyncpa [#allocation6], 0
    %19 = vsyncpa [#allocation7], 0
    %20 = vsyncpa [#allocation16], 0
    // Predicated region
    $region2: #{tpu_custom_call.1} parent=1 // pred_check
      _
    $region3: #{tpu_custom_call.1} parent=1 // pred_check_branch
      %22 = sbr.rel (0) target = $region5
    $region4: #{tpu_custom_call.1} parent=1 // pred_region
      %s24 = ssub.s32 16, 16
      %25 = vsyncadd [#allocation9], %s24
      %s27 = sshll.u32 %s0, 4
      %s28 = int_to_ptr.vmem [resolvable:$true] %s27
      %30 = dma.vmem_to_smem %s28, 16, [#allocation5], [#allocation9]
    $region5: #{tpu_custom_call.1} parent=1 // pred_fallthru
      _
    // Predicated region
    $region6: #{tpu_custom_call.1} parent=1 // pred_check
      _
    $region7: #{tpu_custom_call.1} parent=1 // pred_check_branch
      %32 = sbr.rel (0) target = $region9
    $region8: #{tpu_custom_call.1} parent=1 // pred_region
      %s34 = ssub.s32 16, 16
      %35 = vsyncadd [#allocation11], %s34
      %s37 = sshll.u32 %s1, 4
      %s38 = int_to_ptr.vmem [resolvable:$true] %s37
      %40 = dma.vmem_to_smem %s38, 16, [#allocation10], [#allocation11]
    $region9: #{tpu_custom_call.1} parent=1 // pred_fallthru
      _
    // Predicated region
    $region10: #{tpu_custom_call.1} parent=1 // pred_check
      _
    $region11: #{tpu_custom_call.1} parent=1 // pred_check_branch
      %42 = sbr.rel (0) target = $region13
    $region12: #{tpu_custom_call.1} parent=1 // pred_region
      %s44 = ssub.s32 16, 16
      %45 = vsyncadd [#allocation8], %s44
      %48 = dma.hbm_to_smem %s2, 16, [#allocation12], [#allocation8]
    $region13: #{tpu_custom_call.1} parent=1 // pred_fallthru
      _
    // Predicated region
    $region14: #{tpu_custom_call.1} parent=1 // pred_check
      _
    $region15: #{tpu_custom_call.1} parent=1 // pred_check_branch
      %50 = sbr.rel (0) target = $region17
    $region16: #{tpu_custom_call.1} parent=1 // pred_region
      _
    $region17: #{tpu_custom_call.1} parent=1 // pred_fallthru
      _
    // Predicated region
    $region18: #{tpu_custom_call.1} parent=1 // pred_check
      _
    $region19: #{tpu_custom_call.1} parent=1 // pred_check_branch
      %52 = sbr.rel (0) target = $region21
    $region20: #{tpu_custom_call.1} parent=1 // pred_region
      _
    $region21: #{tpu_custom_call.1} parent=1 // pred_fallthru
      _
    // Predicated region
    $region22: #{tpu_custom_call.1} parent=1 // pred_check
      _
    $region23: #{tpu_custom_call.1} parent=1 // pred_check_branch
      %54 = sbr.rel (0) target = $region25
    $region24: #{tpu_custom_call.1} parent=1 // pred_region
      _
    $region25: #{tpu_custom_call.1} parent=1 // pred_fallthru
      _
    // Predicated region
    $region26: #{tpu_custom_call.1} parent=1 // pred_check
      _
    $region27: #{tpu_custom_call.1} parent=1 // pred_check_branch
      %56 = sbr.rel (0) target = $region29
    $region28: #{tpu_custom_call.1} parent=1 // pred_region
      %s58 = ssub.s32 128, 128
      %59 = vsyncadd [#allocation6], %s58
      %s61 = sshll.u32 [#allocation13], 4
      %s62 = int_to_ptr.vmem [resolvable:$true] %s61
      %64 = dma.hbm_to_vmem [thread:$0]  %s6, 128, %s62, [#allocation6]
    $region29: #{tpu_custom_call.1} parent=1 // pred_fallthru
      _
    // Predicated region
    $region30: #{tpu_custom_call.1} parent=1 // pred_check
      _
    $region31: #{tpu_custom_call.1} parent=1 // pred_check_branch
      %66 = sbr.rel (0) target = $region33
    $region32: #{tpu_custom_call.1} parent=1 // pred_region
      %67 = dma.done [#allocation9], 16
    $region33: #{tpu_custom_call.1} parent=1 // pred_fallthru
      _
    // Predicated region
    $region34: #{tpu_custom_call.1} parent=1 // pred_check
      _
    $region35: #{tpu_custom_call.1} parent=1 // pred_check_branch
      %69 = sbr.rel (0) target = $region37
    $region36: #{tpu_custom_call.1} parent=1 // pred_region
      %70 = dma.done [#allocation11], 16
    $region37: #{tpu_custom_call.1} parent=1 // pred_fallthru
      _
    // Predicated region
    $region38: #{tpu_custom_call.1} parent=1 // pred_check
      _
    $region39: #{tpu_custom_call.1} parent=1 // pred_check_branch
      %72 = sbr.rel (0) target = $region41
    $region40: #{tpu_custom_call.1} parent=1 // pred_region
      %73 = dma.done [#allocation8], 16
    $region41: #{tpu_custom_call.1} parent=1 // pred_fallthru
      _
    // Predicated region
    $region42: #{tpu_custom_call.1} parent=1 // pred_check
      _
    $region43: #{tpu_custom_call.1} parent=1 // pred_check_branch
      %75 = sbr.rel (0) target = $region45
    $region44: #{tpu_custom_call.1} parent=1 // pred_region
      %76 = dma.done [#allocation6], 128
    $region45: #{tpu_custom_call.1} parent=1 // pred_fallthru
      _
    %77 = sfence
    %p78 = scmp.eq.s32.totalorder 0, 0
    // Predicated region
    $region46: #{tpu_custom_call.1} parent=1 // pred_check
      %p79 = pneg %p78
    $region47: #{tpu_custom_call.1} parent=1 // pred_check_branch
      %81 = sbr.rel (%p79) target = $region49
    $region48: #{tpu_custom_call.1} parent=1 // pred_region
      %82 = vst [vmem:[#allocation2] sm:$0xff] 0.0
      %83 = vst [vmem:[#allocation3] sm:$0xff] 0.0
    $region49: #{tpu_custom_call.1} parent=1 // pred_fallthru
      _
    %s84 = sld [smem:[#allocation5]]
    %s85 = sld [smem:[#allocation5 + $0x1]]
    %s86 = sld [smem:[#allocation5 + $0x2]]
    %s87 = sld [smem:[#allocation5 + $0x3]]
    %s88 = sld [smem:[#allocation5 + $0x4]]
    %s89 = sld [smem:[#allocation5 + $0x5]]
    %s90 = sld [smem:[#allocation5 + $0x6]]
    %s91 = sld [smem:[#allocation5 + $0x7]]
    %s92 = sld [smem:[#allocation5 + $0x8]]
    %s93 = sld [smem:[#allocation5 + $0x9]]
    %s94 = sld [smem:[#allocation5 + $0xa]]
    %s95 = sld [smem:[#allocation5 + $0xb]]
    %s96 = sld [smem:[#allocation5 + $0xc]]
    %s97 = sld [smem:[#allocation5 + $0xd]]
    %s98 = sld [smem:[#allocation5 + $0xe]]
    %s99 = sld [smem:[#allocation5 + $0xf]]
    %s100 = sld [smem:[#allocation10]]
    %s101 = sadd.f32 %s84, %s100
    %s102 = sld [smem:[#allocation10 + $0x1]]
    %s103 = sadd.f32 %s88, %s102
    %s104 = sld [smem:[#allocation10 + $0x2]]
    %s105 = sadd.f32 %s92, %s104
    %s106 = sld [smem:[#allocation10 + $0x3]]
    %s107 = sadd.f32 %s96, %s106
    %s108 = sld [smem:[#allocation5 + $0x10]]
    %s109 = sld [smem:[#allocation5 + $0x11]]
    %s110 = sld [smem:[#allocation5 + $0x12]]
    %s111 = sld [smem:[#allocation5 + $0x13]]
    %s112 = sld [smem:[#allocation5 + $0x14]]
    %s113 = sld [smem:[#allocation5 + $0x15]]
    %s114 = sld [smem:[#allocation5 + $0x16]]
    %s115 = sld [smem:[#allocation5 + $0x17]]
    %s116 = sld [smem:[#allocation5 + $0x18]]
    %s117 = sld [smem:[#allocation5 + $0x19]]
    %s118 = sld [smem:[#allocation5 + $0x1a]]
    %s119 = sld [smem:[#allocation5 + $0x1b]]
    %s120 = sld [smem:[#allocation5 + $0x1c]]
    %s121 = sld [smem:[#allocation5 + $0x1d]]
    %s122 = sld [smem:[#allocation5 + $0x1e]]
    %s123 = sld [smem:[#allocation5 + $0x1f]]
    %s124 = sld [smem:[#allocation10 + $0x4]]
    %s125 = sld [smem:[#allocation10 + $0x5]]
    %s126 = sld [smem:[#allocation10 + $0x6]]
    %s127 = sld [smem:[#allocation10 + $0x7]]
    %s128 = sld [smem:[#allocation12]]
    %s129 = sld [smem:[#allocation12 + $0x1]]
    %s130 = sld [smem:[#allocation12 + $0x2]]
    %s131 = sld [smem:[#allocation12 + $0x3]]
    %s132 = sld [smem:[#allocation4]]
    %s133 = sadd.s32 0, 0
    %s134 = scalar_lea.vmem %s4, %s133
    %v135 = vld [vmem:[%s134] sm:$0xff]
    %v136 = vstv %s87
    %v137 = vmul.f32 %v135, %v136
    %v138 = vstv %s86
    %v139 = vadd.f32 %v137, %v138
    %v140 = vmul.f32 %v139, %v135
    %v141 = vstv %s85
    %v142 = vadd.f32 %v140, %v141
    %v143 = vmul.f32 %v142, %v135
    %v144 = vstv %s101
    %v145 = vadd.f32 %v143, %v144
    %v146 = vtanh.pop %v145
    %v147 = vstv %s91
    %v148 = vmul.f32 %v135, %v147
    %v149 = vstv %s90
    %v150 = vadd.f32 %v148, %v149
    %v151 = vmul.f32 %v150, %v135
    %v152 = vstv %s89
    %v153 = vadd.f32 %v151, %v152
    %v154 = vmul.f32 %v153, %v135
    %v155 = vstv %s103
    %v156 = vadd.f32 %v154, %v155
    %v157 = vtanh.pop %v156
    %v158 = vstv %s95
    %v159 = vmul.f32 %v135, %v158
    %v160 = vstv %s94
    %v161 = vadd.f32 %v159, %v160
    %v162 = vmul.f32 %v161, %v135
    %v163 = vstv %s93
    %v164 = vadd.f32 %v162, %v163
    %v165 = vmul.f32 %v164, %v135
    %v166 = vstv %s105
    %v167 = vadd.f32 %v165, %v166
    %v168 = vtanh.pop %v167
    %v169 = vstv %s99
    %v170 = vmul.f32 %v135, %v169
    %v171 = vstv %s98
    %v172 = vadd.f32 %v170, %v171
    %v173 = vmul.f32 %v172, %v135
    %v174 = vstv %s97
    %v175 = vadd.f32 %v173, %v174
    %v176 = vmul.f32 %v175, %v135
    %v177 = vstv %s107
    %v178 = vadd.f32 %v176, %v177
    %v179 = vtanh.pop %v178
    %v180 = vstv %s108
    %v181 = vmul.f32 %v146, %v180
    %v182 = vstv %s124
    %v183 = vadd.f32 %v181, %v182
    %v184 = vstv %s109
    %v185 = vmul.f32 %v157, %v184
    %v186 = vadd.f32 %v183, %v185
    %v187 = vstv %s110
    %v188 = vmul.f32 %v168, %v187
    %v189 = vadd.f32 %v186, %v188
    %v190 = vstv %s111
    %v191 = vmul.f32 %v179, %v190
    %v192 = vadd.f32 %v189, %v191
    %v193 = vtanh.pop %v192
    %v194 = vstv %s112
    %v195 = vmul.f32 %v146, %v194
    %v196 = vstv %s125
    %v197 = vadd.f32 %v195, %v196
    %v198 = vstv %s113
    %v199 = vmul.f32 %v157, %v198
    %v200 = vadd.f32 %v197, %v199
    %v201 = vstv %s114
    %v202 = vmul.f32 %v168, %v201
    %v203 = vadd.f32 %v200, %v202
    %v204 = vstv %s115
    %v205 = vmul.f32 %v179, %v204
    %v206 = vadd.f32 %v203, %v205
    %v207 = vtanh.pop %v206
    %v208 = vstv %s116
    %v209 = vmul.f32 %v146, %v208
    %v210 = vstv %s126
    %v211 = vadd.f32 %v209, %v210
    %v212 = vstv %s117
    %v213 = vmul.f32 %v157, %v212
    %v214 = vadd.f32 %v211, %v213
    %v215 = vstv %s118
    %v216 = vmul.f32 %v168, %v215
    %v217 = vadd.f32 %v214, %v216
    %v218 = vstv %s119
    %v219 = vmul.f32 %v179, %v218
    %v220 = vadd.f32 %v217, %v219
    %v221 = vtanh.pop %v220
    %v222 = vstv %s120
    %v223 = vmul.f32 %v146, %v222
    %v224 = vstv %s127
    %v225 = vadd.f32 %v223, %v224
    %v226 = vstv %s121
    %v227 = vmul.f32 %v157, %v226
    %v228 = vadd.f32 %v225, %v227
    %v229 = vstv %s122
    %v230 = vmul.f32 %v168, %v229
    %v231 = vadd.f32 %v228, %v230
    %v232 = vstv %s123
    %v233 = vmul.f32 %v179, %v232
    %v234 = vadd.f32 %v231, %v233
    %v235 = vtanh.pop %v234
    %v236 = vstv %s128
    %v237 = vmul.f32 %v193, %v236
    %v238 = vstv %s132
    %v239 = vadd.f32 %v237, %v238
    %v240 = vstv %s129
    %v241 = vmul.f32 %v207, %v240
    %v242 = vadd.f32 %v239, %v241
    %v243 = vstv %s130
    %v244 = vmul.f32 %v221, %v243
    %v245 = vadd.f32 %v242, %v244
    %v246 = vstv %s131
    %v247 = vmul.f32 %v235, %v246
    %v248 = vadd.f32 %v245, %v247
    %s249 = scalar_lea.vmem [#allocation14], %s133
    %250 = vst [vmem:[%s249] sm:$0xff] %v248
    %s251 = scalar_lea.vmem %s5, %s133
    %v252 = vld [vmem:[%s251] sm:$0xff]
    %v253 = vmul.f32 %v252, %v248
    %s254 = scalar_lea.vmem [#allocation13], %s133
    %v255 = vld [vmem:[%s254] sm:$0xff]
    %v256 = vmul.f32 %v255, %v248
    %v257 = vld [vmem:[#allocation2] sm:$0xff]
    %v258 = vadd.f32 %v257, %v253
    %259 = vst [vmem:[#allocation2] sm:$0xff] %v258
    %v260 = vld [vmem:[#allocation3] sm:$0xff]
    %v261 = vadd.f32 %v260, %v256
    %262 = vst [vmem:[#allocation3] sm:$0xff] %v261
    // Predicated region
    $region50: #{tpu_custom_call.1} parent=1 // pred_check
      %p263 = pneg %p78
    $region51: #{tpu_custom_call.1} parent=1 // pred_check_branch
      %265 = sbr.rel (%p263) target = $region53
    $region52: #{tpu_custom_call.1} parent=1 // pred_region
      %v266 = vld [vmem:[#allocation2] sm:$0xff]
      %267 = vadd.xlane.f32.xlu0 %v266
      %v268 = vpop.xlane.xlu0 %267
      %v269 = vld [vmem:[#allocation3] sm:$0xff]
      %270 = vadd.xlane.f32.xlu0 %v269
      %v271 = vpop.xlane.xlu0 %270
      %v272 = vmul.f32 %v268, %v268
      %v273 = vmul.f32 %v271, %v271
      %v274 = vadd.f32 %v272, %v273
      %v275 = vrsqrt.pop %v274
      %v276 = vmul.f32 %v274, %v275
      %vm277 = vcmp.eq.f32.partialorder %v274, inf
      %v278 = vsel %vm277, %v274, %v276
      %vm279 = vcmp.eq.f32.partialorder %v274, 0.0
      %v280 = vand.u32 %v274, 2147483648
      %v281 = vsel %vm279, %v280, %v278
      %282 = vst [vmem:[#allocation15] sm:$0xff] %v281
    $region53: #{tpu_custom_call.1} parent=1 // pred_fallthru
      _
    // Predicated region
    $region54: #{tpu_custom_call.1} parent=1 // pred_check
      _
    $region55: #{tpu_custom_call.1} parent=1 // pred_check_branch
      %284 = sbr.rel (0) target = $region57
    $region56: #{tpu_custom_call.1} parent=1 // pred_region
      %s286 = ssub.s32 128, 128
      %287 = vsyncadd [#allocation7], %s286
      %s289 = sshll.u32 [#allocation14], 4
      %s290 = int_to_ptr.vmem [resolvable:$true] %s289
      %292 = dma.vmem_to_hbm [thread:$0]  %s290, 128, %s7, [#allocation7]
    $region57: #{tpu_custom_call.1} parent=1 // pred_fallthru
      _
    // Predicated region
    $region58: #{tpu_custom_call.1} parent=1 // pred_check
      _
    $region59: #{tpu_custom_call.1} parent=1 // pred_check_branch
      %294 = sbr.rel (0) target = $region61
    $region60: #{tpu_custom_call.1} parent=1 // pred_region
      %s296 = ssub.s32 128, 128
      %297 = vsyncadd [#allocation16], %s296
      %s299 = sshll.u32 [#allocation15], 4
      %s300 = int_to_ptr.vmem [resolvable:$true] %s299
      %302 = dma.vmem_to_hbm [thread:$0]  %s300, 128, %s8, [#allocation16]
    $region61: #{tpu_custom_call.1} parent=1 // pred_fallthru
      _
    // Predicated region
    $region62: #{tpu_custom_call.1} parent=1 // pred_check
      _
    $region63: #{tpu_custom_call.1} parent=1 // pred_check_branch
      %304 = sbr.rel (0) target = $region65
    $region64: #{tpu_custom_call.1} parent=1 // pred_region
      %305 = dma.done [#allocation7], 128
    $region65: #{tpu_custom_call.1} parent=1 // pred_fallthru
      _
    // Predicated region
    $region66: #{tpu_custom_call.1} parent=1 // pred_check
      _
    $region67: #{tpu_custom_call.1} parent=1 // pred_check_branch
      %307 = sbr.rel (0) target = $region69
    $region68: #{tpu_custom_call.1} parent=1 // pred_region
      %308 = dma.done [#allocation16], 128
    $region69: #{tpu_custom_call.1} parent=1 // pred_fallthru
      _
    %309 = vsyncpa [#allocation6], 1
    %310 = vsyncpa [#allocation7], 1
    %311 = vsyncpa [#allocation16], 1
    %312 = vsyncpa [#allocation8], 1
    %313 = vsyncpa [#allocation9], 1
    %314 = vsyncpa [#allocation11], 1

</llo_original>
